<compile_context>
chip_gen: v7x
topology: tpu7x:2x2x1
jax: 0.10.0
libtpu: 0.0.40
codegen_flags: <defaults>
</compile_context>

<pallas_src>
import jax
import jax.numpy as jnp
from jax.experimental import pallas as pl
from jax.experimental.pallas import tpu as pltpu

# ---- small config (exercises every branch of the module) -------------------
VOCAB = 128          # token vocabulary (demo-sized, lane-aligned)
TYPE_VOCAB = 2       # type_vocab_size > 0, shared_segment_embeddings = False
EMBED = 16           # embedding_size
HIDDEN = 32          # hidden_size (!= EMBED -> outputs_dense branch active)
LN_EPS = 1e-12       # layer_norm_eps
BATCH = 2
SEQ = 8
TILE_N = 8           # rows (B*S) per grid step


# ----------------------------- Pallas kernel --------------------------------
def embeddings_kernel(tok_ids, seg_ids,                    # scalar-prefetch (SMEM)
                      tok_tab_ref, seg_tab_ref,            # resident tables (VMEM)
                      gamma_ref, beta_ref, wd_ref, bd_ref, # resident weights (VMEM)
                      out_ref):
    base = pl.program_id(0) * TILE_N

    # Build per-row id matrices from SMEM scalars (cheap: TILE_N selects on
    # one vreg each).
    row_iota_v = jax.lax.broadcasted_iota(jnp.int32, (TILE_N, VOCAB), 0)
    col_iota_v = jax.lax.broadcasted_iota(jnp.int32, (TILE_N, VOCAB), 1)
    row_iota_e = jax.lax.broadcasted_iota(jnp.int32, (TILE_N, EMBED), 0)

    tok_mat = jnp.zeros((TILE_N, VOCAB), jnp.int32)
    seg_mat = jnp.zeros((TILE_N, EMBED), jnp.int32)
    for r in range(TILE_N):                                # static, unrolled
        t = tok_ids[base + r]
        s = seg_ids[base + r]
        tok_mat = jnp.where(row_iota_v == r, t, tok_mat)
        seg_mat = jnp.where(row_iota_e == r, s, seg_mat)

    # Token gather as a lane-aligned bf16 one-hot matmul (f32 accumulation).
    # One compare over [TILE_N, VOCAB]; K = 128 exactly -> no MXU K padding.
    onehot = (col_iota_v == tok_mat).astype(jnp.bfloat16)
    x = jnp.dot(onehot, tok_tab_ref[...],
                preferred_element_type=jnp.float32)        # [TILE_N, E] f32

    # Segment embedding via a TYPE_VOCAB-way VPU select (no MXU, no concat).
    seg_emb = jnp.broadcast_to(seg_tab_ref[0:1, :], (TILE_N, EMBED))
    for t in range(1, TYPE_VOCAB):
        seg_emb = jnp.where(seg_mat == t, seg_tab_ref[t:t + 1, :], seg_emb)
    x = x + seg_emb

    # LayerNorm over embedding_size, single fused reduction pass.
    mu = jnp.mean(x, axis=-1, keepdims=True)
    var = jnp.mean(x * x, axis=-1, keepdims=True) - mu * mu
    x = (x - mu) * jax.lax.rsqrt(var + LN_EPS)
    x = x * gamma_ref[...] + beta_ref[...]

    # TODO(synk): training-mode dropout (hidden_dropout_prob) not implemented;
    # it is the identity at inference.

    # outputs_dense (embedding_size != hidden_size); output block is a full
    # 128-lane slab -> unmasked stores.
    out = jnp.dot(x, wd_ref[...], preferred_element_type=jnp.float32) + bd_ref[...]
    out_ref[...] = out.astype(out_ref.dtype)


# ----------------------------- wrapper ---------------------------------------
def bert_embeddings_pallas(input_ids, segment_ids, token_table, segment_table,
                           gamma, beta, w_dense, b_dense):
    B, S = input_ids.shape
    E = token_table.shape[1]
    H = w_dense.shape[1]
    N = B * S
    assert N % TILE_N == 0

    # ids as flat 1-D scalar-prefetch arrays (SMEM: ~4 bytes/row).
    tok = input_ids.reshape(N).astype(jnp.int32)
    seg = segment_ids.reshape(N).astype(jnp.int32)

    # Lane-dense output: zero-pad HIDDEN to a multiple of 128; sliced off below.
    h_pad = pl.cdiv(H, 128) * 128
    wd_pad = jnp.zeros((E, h_pad), w_dense.dtype).at[:, :H].set(w_dense)
    bd_pad = jnp.zeros((1, h_pad), b_dense.dtype).at[:, :H].set(b_dense)

    # Token table streamed in bf16 (halves table DMA; the one-hot is exact in
    # bf16, accumulation stays f32).  In production the table would be stored
    # as a bf16 weight rather than cast per call.
    tok_tab = token_table.astype(jnp.bfloat16)

    def const2d(shape):
        # Resident block: constant block index -> fetched once, no re-DMA.
        return pl.BlockSpec(shape, lambda i, tok_r, seg_r: (0, 0))

    out = pl.pallas_call(
        embeddings_kernel,
        out_shape=jax.ShapeDtypeStruct((N, h_pad), jnp.float32),
        grid_spec=pltpu.PrefetchScalarGridSpec(
            num_scalar_prefetch=2,
            grid=(N // TILE_N,),
            in_specs=[
                const2d((VOCAB, E)),        # token table (bf16), resident
                const2d((TYPE_VOCAB, E)),   # segment table, resident
                const2d((1, E)),            # LayerNorm gamma
                const2d((1, E)),            # LayerNorm beta
                const2d((E, h_pad)),        # W_dense (lane-padded)
                const2d((1, h_pad)),        # b_dense (lane-padded)
            ],
            out_specs=pl.BlockSpec((TILE_N, h_pad),
                                   lambda i, tok_r, seg_r: (i, 0)),
        ),
        compiler_params=pltpu.CompilerParams(
            dimension_semantics=("parallel",),      # row tiles are independent
            vmem_limit_bytes=32 * 1024 * 1024,
        ),
    )(tok, seg, tok_tab, segment_table, gamma, beta, wd_pad, bd_pad)

    return out[:, :H].reshape(B, S, H)


# ----------------------------- pure-JAX reference ----------------------------
def bert_embeddings_ref(input_ids, segment_ids, token_table, segment_table,
                        gamma, beta, w_dense, b_dense):
    x = token_table[input_ids] + segment_table[segment_ids]       # [B, S, E]
    mu = jnp.mean(x, axis=-1, keepdims=True)
    var = jnp.mean((x - mu) ** 2, axis=-1, keepdims=True)
    x = (x - mu) * jax.lax.rsqrt(var + LN_EPS) * gamma[0] + beta[0]
    return jnp.dot(x, w_dense) + b_dense[0]


# ----------------------------- demo / check ----------------------------------
if __name__ == "__main__":
    key = jax.random.PRNGKey(0)
    k_ids, k_tok, k_seg, k_g, k_b, k_wd, k_bd = jax.random.split(key, 7)

    def trunc(k, shape, std=0.02):
        return std * jax.random.truncated_normal(k, -2.0, 2.0, shape, jnp.float32)

    input_ids = jax.random.randint(k_ids, (BATCH, SEQ), 0, VOCAB, dtype=jnp.int32)
    segment_ids = jnp.concatenate(
        [jnp.zeros((BATCH, SEQ // 2), jnp.int32),
         jnp.ones((BATCH, SEQ - SEQ // 2), jnp.int32)], axis=1)

    token_table = trunc(k_tok, (VOCAB, EMBED))
    segment_table = trunc(k_seg, (TYPE_VOCAB, EMBED))
    gamma = 1.0 + trunc(k_g, (1, EMBED))          # LayerNorm weight
    beta = trunc(k_b, (1, EMBED))                 # LayerNorm bias
    w_dense = trunc(k_wd, (EMBED, HIDDEN))        # nn.Linear weight, transposed
    b_dense = trunc(k_bd, (1, HIDDEN))

    out = bert_embeddings_pallas(input_ids, segment_ids, token_table,
                                 segment_table, gamma, beta, w_dense, b_dense)
    out = jax.block_until_ready(out)

    ref = bert_embeddings_ref(input_ids, segment_ids, token_table,
                              segment_table, gamma, beta, w_dense, b_dense)

    assert out.shape == (BATCH, SEQ, HIDDEN)
    assert bool(jnp.all(jnp.isfinite(out)))
    # tolerance sized for bf16 table / default (one-pass bf16) MXU precision
    assert bool(jnp.allclose(out, ref, atol=2e-2, rtol=2e-2))
    print("KERNEL_OK")
</pallas_src>

<mosaic_0001>
module attributes {stable_mosaic.version = 11 : i64} {
  func.func @embeddings_kernel(%arg0: i32, %arg1: memref<16xi32, #tpu.memory_space<smem>>, %arg2: memref<16xi32, #tpu.memory_space<smem>>, %arg3: memref<128x16xbf16, #tpu.memory_space<vmem>>, %arg4: memref<2x16xf32, #tpu.memory_space<vmem>>, %arg5: memref<1x16xf32, #tpu.memory_space<vmem>>, %arg6: memref<1x16xf32, #tpu.memory_space<vmem>>, %arg7: memref<16x128xf32, #tpu.memory_space<vmem>>, %arg8: memref<1x128xf32, #tpu.memory_space<vmem>>, %arg9: memref<8x128xf32, #tpu.memory_space<vmem>>) attributes {dimension_semantics = [#tpu.dimension_semantics<parallel>], iteration_bounds = array<i64: 2>, scalar_prefetch = 2 : i64, scratch_operands = 0 : i64, tpu.core_type = #tpu.core_type<tc>, window_params = [{pipeline_mode = #tpu.pipeline_mode<synchronous>, transform_indices = @transform_0, window_bounds = array<i64: 128, 16>}, {pipeline_mode = #tpu.pipeline_mode<synchronous>, transform_indices = @transform_1, window_bounds = array<i64: 2, 16>}, {pipeline_mode = #tpu.pipeline_mode<synchronous>, transform_indices = @transform_2, window_bounds = array<i64: 1, 16>}, {pipeline_mode = #tpu.pipeline_mode<synchronous>, transform_indices = @transform_3, window_bounds = array<i64: 1, 16>}, {pipeline_mode = #tpu.pipeline_mode<synchronous>, transform_indices = @transform_4, window_bounds = array<i64: 16, 128>}, {pipeline_mode = #tpu.pipeline_mode<synchronous>, transform_indices = @transform_5, window_bounds = array<i64: 1, 128>}, {transform_indices = @transform_6, window_bounds = array<i64: 8, 128>}]} {
    %c8_i32 = arith.constant 8 : i32
    %0 = arith.muli %arg0, %c8_i32 : i32
    %1 = tpu.iota {dimensions = array<i32: 0>} : vector<8x128xi32>
    %2 = tpu.iota {dimensions = array<i32: 1>} : vector<8x128xi32>
    %3 = tpu.iota {dimensions = array<i32: 0>} : vector<8x16xi32>
    %c0_i32 = arith.constant 0 : i32
    %4 = vector.broadcast %c0_i32 : i32 to vector<8x128xi32>
    %c0_i32_0 = arith.constant 0 : i32
    %5 = vector.broadcast %c0_i32_0 : i32 to vector<8x16xi32>
    %c0_i32_1 = arith.constant 0 : i32
    %6 = arith.addi %0, %c0_i32_1 : i32
    %7 = arith.index_cast %6 : i32 to index
    %8 = memref.load %arg1[%7] : memref<16xi32, #tpu.memory_space<smem>>
    %c0_i32_2 = arith.constant 0 : i32
    %9 = arith.addi %0, %c0_i32_2 : i32
    %10 = arith.index_cast %9 : i32 to index
    %11 = memref.load %arg2[%10] : memref<16xi32, #tpu.memory_space<smem>>
    %c0_i32_3 = arith.constant 0 : i32
    %12 = vector.broadcast %c0_i32_3 : i32 to vector<8x128xi32>
    %13 = arith.cmpi eq, %1, %12 : vector<8x128xi32>
    %14 = vector.broadcast %8 : i32 to vector<8x128xi32>
    %15 = arith.select %13, %14, %4 : vector<8x128xi1>, vector<8x128xi32>
    %c0_i32_4 = arith.constant 0 : i32
    %16 = vector.broadcast %c0_i32_4 : i32 to vector<8x16xi32>
    %17 = arith.cmpi eq, %3, %16 : vector<8x16xi32>
    %18 = vector.broadcast %11 : i32 to vector<8x16xi32>
    %19 = arith.select %17, %18, %5 : vector<8x16xi1>, vector<8x16xi32>
    %c1_i32 = arith.constant 1 : i32
    %20 = arith.addi %0, %c1_i32 : i32
    %21 = arith.index_cast %20 : i32 to index
    %22 = memref.load %arg1[%21] : memref<16xi32, #tpu.memory_space<smem>>
    %c1_i32_5 = arith.constant 1 : i32
    %23 = arith.addi %0, %c1_i32_5 : i32
    %24 = arith.index_cast %23 : i32 to index
    %25 = memref.load %arg2[%24] : memref<16xi32, #tpu.memory_space<smem>>
    %c1_i32_6 = arith.constant 1 : i32
    %26 = vector.broadcast %c1_i32_6 : i32 to vector<8x128xi32>
    %27 = arith.cmpi eq, %1, %26 : vector<8x128xi32>
    %28 = vector.broadcast %22 : i32 to vector<8x128xi32>
    %29 = arith.select %27, %28, %15 : vector<8x128xi1>, vector<8x128xi32>
    %c1_i32_7 = arith.constant 1 : i32
    %30 = vector.broadcast %c1_i32_7 : i32 to vector<8x16xi32>
    %31 = arith.cmpi eq, %3, %30 : vector<8x16xi32>
    %32 = vector.broadcast %25 : i32 to vector<8x16xi32>
    %33 = arith.select %31, %32, %19 : vector<8x16xi1>, vector<8x16xi32>
    %c2_i32 = arith.constant 2 : i32
    %34 = arith.addi %0, %c2_i32 : i32
    %35 = arith.index_cast %34 : i32 to index
    %36 = memref.load %arg1[%35] : memref<16xi32, #tpu.memory_space<smem>>
    %c2_i32_8 = arith.constant 2 : i32
    %37 = arith.addi %0, %c2_i32_8 : i32
    %38 = arith.index_cast %37 : i32 to index
    %39 = memref.load %arg2[%38] : memref<16xi32, #tpu.memory_space<smem>>
    %c2_i32_9 = arith.constant 2 : i32
    %40 = vector.broadcast %c2_i32_9 : i32 to vector<8x128xi32>
    %41 = arith.cmpi eq, %1, %40 : vector<8x128xi32>
    %42 = vector.broadcast %36 : i32 to vector<8x128xi32>
    %43 = arith.select %41, %42, %29 : vector<8x128xi1>, vector<8x128xi32>
    %c2_i32_10 = arith.constant 2 : i32
    %44 = vector.broadcast %c2_i32_10 : i32 to vector<8x16xi32>
    %45 = arith.cmpi eq, %3, %44 : vector<8x16xi32>
    %46 = vector.broadcast %39 : i32 to vector<8x16xi32>
    %47 = arith.select %45, %46, %33 : vector<8x16xi1>, vector<8x16xi32>
    %c3_i32 = arith.constant 3 : i32
    %48 = arith.addi %0, %c3_i32 : i32
    %49 = arith.index_cast %48 : i32 to index
    %50 = memref.load %arg1[%49] : memref<16xi32, #tpu.memory_space<smem>>
    %c3_i32_11 = arith.constant 3 : i32
    %51 = arith.addi %0, %c3_i32_11 : i32
    %52 = arith.index_cast %51 : i32 to index
    %53 = memref.load %arg2[%52] : memref<16xi32, #tpu.memory_space<smem>>
    %c3_i32_12 = arith.constant 3 : i32
    %54 = vector.broadcast %c3_i32_12 : i32 to vector<8x128xi32>
    %55 = arith.cmpi eq, %1, %54 : vector<8x128xi32>
    %56 = vector.broadcast %50 : i32 to vector<8x128xi32>
    %57 = arith.select %55, %56, %43 : vector<8x128xi1>, vector<8x128xi32>
    %c3_i32_13 = arith.constant 3 : i32
    %58 = vector.broadcast %c3_i32_13 : i32 to vector<8x16xi32>
    %59 = arith.cmpi eq, %3, %58 : vector<8x16xi32>
    %60 = vector.broadcast %53 : i32 to vector<8x16xi32>
    %61 = arith.select %59, %60, %47 : vector<8x16xi1>, vector<8x16xi32>
    %c4_i32 = arith.constant 4 : i32
    %62 = arith.addi %0, %c4_i32 : i32
    %63 = arith.index_cast %62 : i32 to index
    %64 = memref.load %arg1[%63] : memref<16xi32, #tpu.memory_space<smem>>
    %c4_i32_14 = arith.constant 4 : i32
    %65 = arith.addi %0, %c4_i32_14 : i32
    %66 = arith.index_cast %65 : i32 to index
    %67 = memref.load %arg2[%66] : memref<16xi32, #tpu.memory_space<smem>>
    %c4_i32_15 = arith.constant 4 : i32
    %68 = vector.broadcast %c4_i32_15 : i32 to vector<8x128xi32>
    %69 = arith.cmpi eq, %1, %68 : vector<8x128xi32>
    %70 = vector.broadcast %64 : i32 to vector<8x128xi32>
    %71 = arith.select %69, %70, %57 : vector<8x128xi1>, vector<8x128xi32>
    %c4_i32_16 = arith.constant 4 : i32
    %72 = vector.broadcast %c4_i32_16 : i32 to vector<8x16xi32>
    %73 = arith.cmpi eq, %3, %72 : vector<8x16xi32>
    %74 = vector.broadcast %67 : i32 to vector<8x16xi32>
    %75 = arith.select %73, %74, %61 : vector<8x16xi1>, vector<8x16xi32>
    %c5_i32 = arith.constant 5 : i32
    %76 = arith.addi %0, %c5_i32 : i32
    %77 = arith.index_cast %76 : i32 to index
    %78 = memref.load %arg1[%77] : memref<16xi32, #tpu.memory_space<smem>>
    %c5_i32_17 = arith.constant 5 : i32
    %79 = arith.addi %0, %c5_i32_17 : i32
    %80 = arith.index_cast %79 : i32 to index
    %81 = memref.load %arg2[%80] : memref<16xi32, #tpu.memory_space<smem>>
    %c5_i32_18 = arith.constant 5 : i32
    %82 = vector.broadcast %c5_i32_18 : i32 to vector<8x128xi32>
    %83 = arith.cmpi eq, %1, %82 : vector<8x128xi32>
    %84 = vector.broadcast %78 : i32 to vector<8x128xi32>
    %85 = arith.select %83, %84, %71 : vector<8x128xi1>, vector<8x128xi32>
    %c5_i32_19 = arith.constant 5 : i32
    %86 = vector.broadcast %c5_i32_19 : i32 to vector<8x16xi32>
    %87 = arith.cmpi eq, %3, %86 : vector<8x16xi32>
    %88 = vector.broadcast %81 : i32 to vector<8x16xi32>
    %89 = arith.select %87, %88, %75 : vector<8x16xi1>, vector<8x16xi32>
    %c6_i32 = arith.constant 6 : i32
    %90 = arith.addi %0, %c6_i32 : i32
    %91 = arith.index_cast %90 : i32 to index
    %92 = memref.load %arg1[%91] : memref<16xi32, #tpu.memory_space<smem>>
    %c6_i32_20 = arith.constant 6 : i32
    %93 = arith.addi %0, %c6_i32_20 : i32
    %94 = arith.index_cast %93 : i32 to index
    %95 = memref.load %arg2[%94] : memref<16xi32, #tpu.memory_space<smem>>
    %c6_i32_21 = arith.constant 6 : i32
    %96 = vector.broadcast %c6_i32_21 : i32 to vector<8x128xi32>
    %97 = arith.cmpi eq, %1, %96 : vector<8x128xi32>
    %98 = vector.broadcast %92 : i32 to vector<8x128xi32>
    %99 = arith.select %97, %98, %85 : vector<8x128xi1>, vector<8x128xi32>
    %c6_i32_22 = arith.constant 6 : i32
    %100 = vector.broadcast %c6_i32_22 : i32 to vector<8x16xi32>
    %101 = arith.cmpi eq, %3, %100 : vector<8x16xi32>
    %102 = vector.broadcast %95 : i32 to vector<8x16xi32>
    %103 = arith.select %101, %102, %89 : vector<8x16xi1>, vector<8x16xi32>
    %c7_i32 = arith.constant 7 : i32
    %104 = arith.addi %0, %c7_i32 : i32
    %105 = arith.index_cast %104 : i32 to index
    %106 = memref.load %arg1[%105] : memref<16xi32, #tpu.memory_space<smem>>
    %c7_i32_23 = arith.constant 7 : i32
    %107 = arith.addi %0, %c7_i32_23 : i32
    %108 = arith.index_cast %107 : i32 to index
    %109 = memref.load %arg2[%108] : memref<16xi32, #tpu.memory_space<smem>>
    %c7_i32_24 = arith.constant 7 : i32
    %110 = vector.broadcast %c7_i32_24 : i32 to vector<8x128xi32>
    %111 = arith.cmpi eq, %1, %110 : vector<8x128xi32>
    %112 = vector.broadcast %106 : i32 to vector<8x128xi32>
    %113 = arith.select %111, %112, %99 : vector<8x128xi1>, vector<8x128xi32>
    %c7_i32_25 = arith.constant 7 : i32
    %114 = vector.broadcast %c7_i32_25 : i32 to vector<8x16xi32>
    %115 = arith.cmpi eq, %3, %114 : vector<8x16xi32>
    %116 = vector.broadcast %109 : i32 to vector<8x16xi32>
    %117 = arith.select %115, %116, %103 : vector<8x16xi1>, vector<8x16xi32>
    %118 = arith.cmpi eq, %2, %113 : vector<8x128xi32>
    %119 = arith.extui %118 : vector<8x128xi1> to vector<8x128xi32>
    %120 = arith.sitofp %119 : vector<8x128xi32> to vector<8x128xf32>
    %121 = arith.truncf %120 : vector<8x128xf32> to vector<8x128xbf16>
    %c0 = arith.constant 0 : index
    %c0_26 = arith.constant 0 : index
    %122 = vector.load %arg3[%c0, %c0_26] : memref<128x16xbf16, #tpu.memory_space<vmem>>, vector<128x16xbf16>
    %cst = arith.constant dense<0.000000e+00> : vector<8x16xf32>
    %123 = tpu.matmul %121, %122, %cst {dimension_numbers = #tpu.dot_dimension_numbers<[1], [0], [0], [1], [0, 0, 1, 1], [], []>} : vector<8x128xbf16>, vector<128x16xbf16>, vector<8x16xf32> -> vector<8x16xf32>
    %c0_27 = arith.constant 0 : index
    %c0_28 = arith.constant 0 : index
    %124 = vector.load %arg4[%c0_27, %c0_28] : memref<2x16xf32, #tpu.memory_space<vmem>>, vector<1x16xf32>
    %125 = vector.shape_cast %124 : vector<1x16xf32> to vector<1x16xf32>
    %126 = vector.broadcast %125 : vector<1x16xf32> to vector<8x16xf32>
    %c1_i32_29 = arith.constant 1 : i32
    %127 = vector.broadcast %c1_i32_29 : i32 to vector<8x16xi32>
    %128 = arith.cmpi eq, %117, %127 : vector<8x16xi32>
    %c1 = arith.constant 1 : index
    %c0_30 = arith.constant 0 : index
    %129 = vector.load %arg4[%c1, %c0_30] : memref<2x16xf32, #tpu.memory_space<vmem>>, vector<1x16xf32>
    %130 = vector.shape_cast %129 : vector<1x16xf32> to vector<1x16xf32>
    %131 = vector.broadcast %130 : vector<1x16xf32> to vector<8x16xf32>
    %132 = arith.select %128, %131, %126 : vector<8x16xi1>, vector<8x16xf32>
    %133 = arith.addf %123, %132 : vector<8x16xf32>
    %cst_31 = arith.constant dense<0.000000e+00> : vector<8xf32>
    %134 = vector.multi_reduction <add>, %133, %cst_31 [1] : vector<8x16xf32> to vector<8xf32>
    %135 = vector.shape_cast %134 : vector<8xf32> to vector<8x1xf32>
    %cst_32 = arith.constant 1.600000e+01 : f32
    %136 = vector.broadcast %cst_32 : f32 to vector<8x1xf32>
    %137 = arith.divf %135, %136 : vector<8x1xf32>
    %138 = arith.mulf %133, %133 : vector<8x16xf32>
    %cst_33 = arith.constant dense<0.000000e+00> : vector<8xf32>
    %139 = vector.multi_reduction <add>, %138, %cst_33 [1] : vector<8x16xf32> to vector<8xf32>
    %140 = vector.shape_cast %139 : vector<8xf32> to vector<8x1xf32>
    %cst_34 = arith.constant 1.600000e+01 : f32
    %141 = vector.broadcast %cst_34 : f32 to vector<8x1xf32>
    %142 = arith.divf %140, %141 : vector<8x1xf32>
    %143 = arith.mulf %137, %137 : vector<8x1xf32>
    %144 = arith.subf %142, %143 : vector<8x1xf32>
    %145 = vector.broadcast %137 : vector<8x1xf32> to vector<8x16xf32>
    %146 = arith.subf %133, %145 : vector<8x16xf32>
    %cst_35 = arith.constant 9.99999996E-13 : f32
    %147 = vector.broadcast %cst_35 : f32 to vector<8x1xf32>
    %148 = arith.addf %144, %147 : vector<8x1xf32>
    %149 = math.rsqrt %148 : vector<8x1xf32>
    %150 = vector.broadcast %149 : vector<8x1xf32> to vector<8x16xf32>
    %151 = arith.mulf %146, %150 : vector<8x16xf32>
    %c0_36 = arith.constant 0 : index
    %c0_37 = arith.constant 0 : index
    %152 = vector.load %arg5[%c0_36, %c0_37] : memref<1x16xf32, #tpu.memory_space<vmem>>, vector<1x16xf32>
    %153 = vector.broadcast %152 : vector<1x16xf32> to vector<8x16xf32>
    %154 = arith.mulf %151, %153 : vector<8x16xf32>
    %c0_38 = arith.constant 0 : index
    %c0_39 = arith.constant 0 : index
    %155 = vector.load %arg6[%c0_38, %c0_39] : memref<1x16xf32, #tpu.memory_space<vmem>>, vector<1x16xf32>
    %156 = vector.broadcast %155 : vector<1x16xf32> to vector<8x16xf32>
    %157 = arith.addf %154, %156 : vector<8x16xf32>
    %c0_40 = arith.constant 0 : index
    %c0_41 = arith.constant 0 : index
    %158 = vector.load %arg7[%c0_40, %c0_41] : memref<16x128xf32, #tpu.memory_space<vmem>>, vector<16x128xf32>
    %cst_42 = arith.constant dense<0.000000e+00> : vector<8x128xf32>
    %159 = tpu.matmul %157, %158, %cst_42 {dimension_numbers = #tpu.dot_dimension_numbers<[1], [0], [0], [1], [0, 0, 1, 1], [], []>} : vector<8x16xf32>, vector<16x128xf32>, vector<8x128xf32> -> vector<8x128xf32>
    %c0_43 = arith.constant 0 : index
    %c0_44 = arith.constant 0 : index
    %160 = vector.load %arg8[%c0_43, %c0_44] : memref<1x128xf32, #tpu.memory_space<vmem>>, vector<1x128xf32>
    %161 = vector.broadcast %160 : vector<1x128xf32> to vector<8x128xf32>
    %162 = arith.addf %159, %161 : vector<8x128xf32>
    %c0_45 = arith.constant 0 : index
    %c0_46 = arith.constant 0 : index
    %163 = vector.load %arg9[%c0_45, %c0_46] : memref<8x128xf32, #tpu.memory_space<vmem>>, vector<8x128xf32>
    tpu.vector_store %arg9[%c0_45, %c0_46], %162 {strides = array<i32>} : memref<8x128xf32, #tpu.memory_space<vmem>>, vector<8x128xf32>,
    return
  }
  func.func @transform_0(%arg0: i32, %arg1: memref<16xi32, #tpu.memory_space<smem>>, %arg2: memref<16xi32, #tpu.memory_space<smem>>) -> (i32, i32) {
    %c0_i32 = arith.constant 0 : i32
    %c0_i32_0 = arith.constant 0 : i32
    %c0_i32_1 = arith.constant 0 : i32
    return %c0_i32, %c0_i32_0 : i32, i32
  }
  func.func @transform_1(%arg0: i32, %arg1: memref<16xi32, #tpu.memory_space<smem>>, %arg2: memref<16xi32, #tpu.memory_space<smem>>) -> (i32, i32) {
    %c0_i32 = arith.constant 0 : i32
    %c0_i32_0 = arith.constant 0 : i32
    %c0_i32_1 = arith.constant 0 : i32
    return %c0_i32, %c0_i32_0 : i32, i32
  }
  func.func @transform_2(%arg0: i32, %arg1: memref<16xi32, #tpu.memory_space<smem>>, %arg2: memref<16xi32, #tpu.memory_space<smem>>) -> (i32, i32) {
    %c0_i32 = arith.constant 0 : i32
    %c0_i32_0 = arith.constant 0 : i32
    %c0_i32_1 = arith.constant 0 : i32
    return %c0_i32, %c0_i32_0 : i32, i32
  }
  func.func @transform_3(%arg0: i32, %arg1: memref<16xi32, #tpu.memory_space<smem>>, %arg2: memref<16xi32, #tpu.memory_space<smem>>) -> (i32, i32) {
    %c0_i32 = arith.constant 0 : i32
    %c0_i32_0 = arith.constant 0 : i32
    %c0_i32_1 = arith.constant 0 : i32
    return %c0_i32, %c0_i32_0 : i32, i32
  }
  func.func @transform_4(%arg0: i32, %arg1: memref<16xi32, #tpu.memory_space<smem>>, %arg2: memref<16xi32, #tpu.memory_space<smem>>) -> (i32, i32) {
    %c0_i32 = arith.constant 0 : i32
    %c0_i32_0 = arith.constant 0 : i32
    %c0_i32_1 = arith.constant 0 : i32
    return %c0_i32, %c0_i32_0 : i32, i32
  }
  func.func @transform_5(%arg0: i32, %arg1: memref<16xi32, #tpu.memory_space<smem>>, %arg2: memref<16xi32, #tpu.memory_space<smem>>) -> (i32, i32) {
    %c0_i32 = arith.constant 0 : i32
    %c0_i32_0 = arith.constant 0 : i32
    %c0_i32_1 = arith.constant 0 : i32
    return %c0_i32, %c0_i32_0 : i32, i32
  }
  func.func @transform_6(%arg0: i32, %arg1: memref<16xi32, #tpu.memory_space<smem>>, %arg2: memref<16xi32, #tpu.memory_space<smem>>) -> (i32, i32) {
    %c0_i32 = arith.constant 0 : i32
    %c0_i32_0 = arith.constant 0 : i32
    return %arg0, %c0_i32 : i32, i32
  }
}

</mosaic_0001>

<llo_original>
// kernel: tpu_custom_call.1
$region0: #{tpu_custom_call.1}
  #allocation0 [shape = 'u32[]', space=smem, size = 0x4, offset = 0x4, fixed_abs, tag = 'smem constant byte address 0x4 - core index']
  #allocation1 [shape = 'u32[144,128]{1,0:T(1,128)}', space=vmem, size = 0x12000, scoped, tag = 'internal scratch']
  #allocation2 [shape = 's32[1]{0}', space=sflag, size = 0x4, scoped, tag = 'scoped memory for tpu_custom_call.1']
  #allocation3 [shape = 'u8[512]{0}', space=smem, size = 0x200, scoped, tag = 'prefetched SMEM operand 0']
  #allocation4 [shape = 'u8[512]{0}', space=smem, size = 0x200, scoped, tag = 'prefetched SMEM operand 1']
  %s0 = inlined_call_operand.vmem [shape: s32[16], index: 0, kind: input, shape index: {}]
  %s1 = inlined_call_operand.vmem [shape: s32[16], index: 1, kind: input, shape index: {}]
  %s2 = inlined_call_operand.vmem [shape: bf16[128,16], index: 2, kind: input, shape index: {}]
  %s3 = inlined_call_operand.vmem [shape: f32[2,16], index: 3, kind: input, shape index: {}]
  %s4 = inlined_call_operand.vmem [shape: f32[1,16], index: 4, kind: input, shape index: {}]
  %s5 = inlined_call_operand.vmem [shape: f32[1,16], index: 5, kind: input, shape index: {}]
  %s6 = inlined_call_operand.vmem [shape: f32[16,128], index: 6, kind: input, shape index: {}]
  %s7 = inlined_call_operand.vmem [shape: f32[1,128], index: 7, kind: input, shape index: {}]
  %s8 = inlined_call_operand.hbm [shape: f32[16,128], index: 8, kind: output, shape index: {}]
  %s9 = sld [smem:[#allocation0]]
  $region57: #{tpu_custom_call.1} parent=0
    _
  %s11 = ssub.s32 1, %s9
  %s12 = scalar_select 0, %s11, %s9
  %s13 = sshll.u32 %s0, 4
  %s14 = int_to_ptr.vmem [resolvable:$true] %s13
  %16 = dma.vmem_to_smem %s14, 16, [#allocation3], [#allocation2]
  %s17 = sshll.u32 %s1, 4
  %s18 = int_to_ptr.vmem [resolvable:$true] %s17
  %20 = dma.vmem_to_smem %s18, 16, [#allocation4], [#allocation2]
  %21 = dma.done [#allocation2], 32
  %22 = sfence
  $region1: #{tpu_custom_call.1} parent=0
    #allocation5 [shape = 'u8[8192]{0}', space=vmem, size = 0x2000, scoped, tag = 'output window, operand 0']
    #allocation6 [shape = 's32[2]{0}', space=sflag, size = 0x8, scoped, tag = 'scoped memory for tpu_custom_call.1']
    %23 = vsyncpa [#allocation6], 0
    %s24 = scalar_lea.sflag [#allocation6], 1
    %25 = vsyncpa %s24, 0
    loop: start=0, step=1, limit=4
    $region2: #{tpu_custom_call.1} parent=1 // loop_pre_header
      _
    $region3: #{tpu_custom_call.1} parent=1 // loop_header
      %s27 = sphi 0, %s31
      %p28 = scmp.ge.s32.totalorder %s27, 4
      %s35 = sphi 0, %s35
      %s37 = sphi 0, %s35
      %s38 = sphi 0, %s37
      %s52 = sphi 0, %s38
      %s56 = sphi 0, %s56
      %s58 = sphi 0, %s56
      %s59 = sphi 0, %s58
      %s73 = sphi 0, %s59
      %s77 = sphi 0, %s77
      %s79 = sphi 0, %s77
      %s80 = sphi 0, %s79
      %s94 = sphi 0, %s80
      %s98 = sphi 0, %s98
      %s100 = sphi 0, %s98
      %s101 = sphi 0, %s100
      %s115 = sphi 0, %s101
      %s119 = sphi 0, %s119
      %s121 = sphi 0, %s119
      %s122 = sphi 0, %s121
      %s136 = sphi 0, %s122
      %s140 = sphi 0, %s140
      %s142 = sphi 0, %s140
      %s143 = sphi 0, %s142
      %s157 = sphi 0, %s143
      %s163 = sphi 0, %s165
      %s166 = sphi 0, %s163
      %s167 = sphi 0, %s166
      %s183 = sphi 0, %s167
    $region4: #{tpu_custom_call.1} parent=1 // loop_header_branch
      %30 = sbr.rel (%p28) target = $region8
    $region5: #{tpu_custom_call.1} parent=1 // loop_body
      %s32 = ssub.s32 %s27, 1
      %s33 = ssub.s32 %s27, 2
      %s34 = sadd.s32 %s27, 1
      %s36 = sadd.s32 %s35, 1
      %p39 = scmp.eq.s32.totalorder %s27, 1
      %p40 = scmp.ne.s32.totalorder %s35, %s37
      %p41 = scmp.eq.s32.totalorder %s27, 0
      %p42 = por %p40, %p41
      %p43 = scmp.ne.s32.totalorder %s35, %s37
      %p44 = scmp.eq.s32.totalorder %s32, 1
      %p45 = por %p43, %p44
      %p46 = scmp.ne.s32.totalorder %s37, %s38
      %p47 = scmp.eq.s32.totalorder %s32, 0
      %p48 = por %p46, %p47
      %p49 = scmp.ne.s32.totalorder %s37, %s38
      %p50 = scmp.eq.s32.totalorder %s33, 1
      %p51 = por %p49, %p50
      %p53 = scmp.ne.s32.totalorder %s38, %s52
      %p54 = scmp.eq.s32.totalorder %s33, 0
      %p55 = por %p53, %p54
      %s57 = sadd.s32 %s56, 1
      %p60 = scmp.eq.s32.totalorder %s27, 1
      %p61 = scmp.ne.s32.totalorder %s56, %s58
      %p62 = scmp.eq.s32.totalorder %s27, 0
      %p63 = por %p61, %p62
      %p64 = scmp.ne.s32.totalorder %s56, %s58
      %p65 = scmp.eq.s32.totalorder %s32, 1
      %p66 = por %p64, %p65
      %p67 = scmp.ne.s32.totalorder %s58, %s59
      %p68 = scmp.eq.s32.totalorder %s32, 0
      %p69 = por %p67, %p68
      %p70 = scmp.ne.s32.totalorder %s58, %s59
      %p71 = scmp.eq.s32.totalorder %s33, 1
      %p72 = por %p70, %p71
      %p74 = scmp.ne.s32.totalorder %s59, %s73
      %p75 = scmp.eq.s32.totalorder %s33, 0
      %p76 = por %p74, %p75
      %s78 = sadd.s32 %s77, 1
      %p81 = scmp.eq.s32.totalorder %s27, 1
      %p82 = scmp.ne.s32.totalorder %s77, %s79
      %p83 = scmp.eq.s32.totalorder %s27, 0
      %p84 = por %p82, %p83
      %p85 = scmp.ne.s32.totalorder %s77, %s79
      %p86 = scmp.eq.s32.totalorder %s32, 1
      %p87 = por %p85, %p86
      %p88 = scmp.ne.s32.totalorder %s79, %s80
      %p89 = scmp.eq.s32.totalorder %s32, 0
      %p90 = por %p88, %p89
      %p91 = scmp.ne.s32.totalorder %s79, %s80
      %p92 = scmp.eq.s32.totalorder %s33, 1
      %p93 = por %p91, %p92
      %p95 = scmp.ne.s32.totalorder %s80, %s94
      %p96 = scmp.eq.s32.totalorder %s33, 0
      %p97 = por %p95, %p96
      %s99 = sadd.s32 %s98, 1
      %p102 = scmp.eq.s32.totalorder %s27, 1
      %p103 = scmp.ne.s32.totalorder %s98, %s100
      %p104 = scmp.eq.s32.totalorder %s27, 0
      %p105 = por %p103, %p104
      %p106 = scmp.ne.s32.totalorder %s98, %s100
      %p107 = scmp.eq.s32.totalorder %s32, 1
      %p108 = por %p106, %p107
      %p109 = scmp.ne.s32.totalorder %s100, %s101
      %p110 = scmp.eq.s32.totalorder %s32, 0
      %p111 = por %p109, %p110
      %p112 = scmp.ne.s32.totalorder %s100, %s101
      %p113 = scmp.eq.s32.totalorder %s33, 1
      %p114 = por %p112, %p113
      %p116 = scmp.ne.s32.totalorder %s101, %s115
      %p117 = scmp.eq.s32.totalorder %s33, 0
      %p118 = por %p116, %p117
      %s120 = sadd.s32 %s119, 1
      %p123 = scmp.eq.s32.totalorder %s27, 1
      %p124 = scmp.ne.s32.totalorder %s119, %s121
      %p125 = scmp.eq.s32.totalorder %s27, 0
      %p126 = por %p124, %p125
      %p127 = scmp.ne.s32.totalorder %s119, %s121
      %p128 = scmp.eq.s32.totalorder %s32, 1
      %p129 = por %p127, %p128
      %p130 = scmp.ne.s32.totalorder %s121, %s122
      %p131 = scmp.eq.s32.totalorder %s32, 0
      %p132 = por %p130, %p131
      %p133 = scmp.ne.s32.totalorder %s121, %s122
      %p134 = scmp.eq.s32.totalorder %s33, 1
      %p135 = por %p133, %p134
      %p137 = scmp.ne.s32.totalorder %s122, %s136
      %p138 = scmp.eq.s32.totalorder %s33, 0
      %p139 = por %p137, %p138
      %s141 = sadd.s32 %s140, 1
      %p144 = scmp.eq.s32.totalorder %s27, 1
      %p145 = scmp.ne.s32.totalorder %s140, %s142
      %p146 = scmp.eq.s32.totalorder %s27, 0
      %p147 = por %p145, %p146
      %p148 = scmp.ne.s32.totalorder %s140, %s142
      %p149 = scmp.eq.s32.totalorder %s32, 1
      %p150 = por %p148, %p149
      %p151 = scmp.ne.s32.totalorder %s142, %s143
      %p152 = scmp.eq.s32.totalorder %s32, 0
      %p153 = por %p151, %p152
      %p154 = scmp.ne.s32.totalorder %s142, %s143
      %p155 = scmp.eq.s32.totalorder %s33, 1
      %p156 = por %p154, %p155
      %p158 = scmp.ne.s32.totalorder %s143, %s157
      %p159 = scmp.eq.s32.totalorder %s33, 0
      %p160 = por %p158, %p159
      %s161 = ssub.s32 %s27, %s34
      %p162 = scmp.eq.s32.totalorder %s161, 0
      %s164 = sadd.s32 %s163, 1
      %s165 = scalar_select %p162, %s163, %s164
      %p168 = pneg %p162
      %p169 = scmp.eq.s32.totalorder %s27, 1
      %p170 = por %p168, %p169
      %p171 = scmp.ne.s32.totalorder %s163, %s166
      %p172 = scmp.eq.s32.totalorder %s27, 0
      %p173 = por %p171, %p172
      %p174 = scmp.ne.s32.totalorder %s163, %s166
      %p175 = scmp.eq.s32.totalorder %s32, 1
      %p176 = por %p174, %p175
      %p177 = scmp.ne.s32.totalorder %s166, %s167
      %p178 = scmp.eq.s32.totalorder %s32, 0
      %p179 = por %p177, %p178
      %p180 = scmp.ne.s32.totalorder %s166, %s167
      %p181 = scmp.eq.s32.totalorder %s33, 1
      %p182 = por %p180, %p181
      %p184 = scmp.ne.s32.totalorder %s167, %s183
      %p185 = scmp.eq.s32.totalorder %s33, 0
      %p186 = por %p184, %p185
      %p187 = scmp.le.s32.totalorder 1, %s27
      %p188 = scmp.lt.s32.totalorder %s27, 3
      %p189 = pnand %p187, %p188
      %p190 = pneg %p189
      // Predicated region
      $region9: #{tpu_custom_call.1} parent=5 // pred_check
        _
      $region10: #{tpu_custom_call.1} parent=5 // pred_check_branch
        %192 = sbr.rel (%p189) target = $region12
      $region11: #{tpu_custom_call.1} parent=5 // pred_region
        %s193 = ssub.s32 %s27, 1
        // Predicated region
        $region13: #{tpu_custom_call.1} parent=11 // pred_check
          %p194 = pneg %p48
        $region14: #{tpu_custom_call.1} parent=11 // pred_check_branch
          %196 = sbr.rel (%p194) target = $region16
        $region15: #{tpu_custom_call.1} parent=11 // pred_region
          _
        $region16: #{tpu_custom_call.1} parent=11 // pred_fallthru
          _
        // Predicated region
        $region17: #{tpu_custom_call.1} parent=11 // pred_check
          %p197 = pneg %p69
        $region18: #{tpu_custom_call.1} parent=11 // pred_check_branch
          %199 = sbr.rel (%p197) target = $region20
        $region19: #{tpu_custom_call.1} parent=11 // pred_region
          _
        $region20: #{tpu_custom_call.1} parent=11 // pred_fallthru
          _
        // Predicated region
        $region21: #{tpu_custom_call.1} parent=11 // pred_check
          %p200 = pneg %p90
        $region22: #{tpu_custom_call.1} parent=11 // pred_check_branch
          %202 = sbr.rel (%p200) target = $region24
        $region23: #{tpu_custom_call.1} parent=11 // pred_region
          _
        $region24: #{tpu_custom_call.1} parent=11 // pred_fallthru
          _
        // Predicated region
        $region25: #{tpu_custom_call.1} parent=11 // pred_check
          %p203 = pneg %p111
        $region26: #{tpu_custom_call.1} parent=11 // pred_check_branch
          %205 = sbr.rel (%p203) target = $region28
        $region27: #{tpu_custom_call.1} parent=11 // pred_region
          _
        $region28: #{tpu_custom_call.1} parent=11 // pred_fallthru
          _
        // Predicated region
        $region29: #{tpu_custom_call.1} parent=11 // pred_check
          %p206 = pneg %p132
        $region30: #{tpu_custom_call.1} parent=11 // pred_check_branch
          %208 = sbr.rel (%p206) target = $region32
        $region31: #{tpu_custom_call.1} parent=11 // pred_region
          _
        $region32: #{tpu_custom_call.1} parent=11 // pred_fallthru
          _
        // Predicated region
        $region33: #{tpu_custom_call.1} parent=11 // pred_check
          %p209 = pneg %p153
        $region34: #{tpu_custom_call.1} parent=11 // pred_check_branch
          %211 = sbr.rel (%p209) target = $region36
        $region35: #{tpu_custom_call.1} parent=11 // pred_region
          _
        $region36: #{tpu_custom_call.1} parent=11 // pred_fallthru
          _
      $region12: #{tpu_custom_call.1} parent=5 // pred_fallthru
        _
      %p212 = scmp.lt.s32.totalorder %s27, 2
      // Predicated region
      $region37: #{tpu_custom_call.1} parent=5 // pred_check
        %p213 = pneg %p212
      $region38: #{tpu_custom_call.1} parent=5 // pred_check_branch
        %215 = sbr.rel (%p213) target = $region40
      $region39: #{tpu_custom_call.1} parent=5 // pred_region
        _
      $region40: #{tpu_custom_call.1} parent=5 // pred_fallthru
        _
      %p216 = scmp.le.s32.totalorder 1, %s27
      %p217 = scmp.lt.s32.totalorder %s27, 3
      %p218 = pnand %p216, %p217
      %p219 = pneg %p218
      // Predicated region
      $region41: #{tpu_custom_call.1} parent=5 // pred_check
        _
      $region42: #{tpu_custom_call.1} parent=5 // pred_check_branch
        %221 = sbr.rel (%p218) target = $region44
      $region43: #{tpu_custom_call.1} parent=5 // pred_region
        %s222 = ssub.s32 %s27, 1
        %p223 = pneg %p48
        %p224 = pneg %p45
        %p225 = pneg %p69
        %p226 = pneg %p66
        %p227 = pneg %p90
        %p228 = pneg %p87
        %p229 = pneg %p111
        %p230 = pneg %p108
        %p231 = pneg %p132
        %p232 = pneg %p129
        %p233 = pneg %p153
        %p234 = pneg %p150
        %p235 = pneg %p179
        %p236 = pneg %p176
        %s237 = sand.u32 %s166, 1
        %s238 = scalar_lea.sflag [#allocation6], %s237
        %s239 = sand.u32 %s166, 1
        %s240 = smul.addr %s239, 8
        %s241 = scalar_lea.vmem [#allocation5], %s240
        %s243 = smul.u32 %s32, 8
        %v244 = vlaneseq
        %v245 = vshrl.u32 %v244, 7
        %v246 = vlaneseq
        %v247 = vand.u32 %v246, 127
        %s248 = sld [smem:[#allocation3 + %s243]]
        %s249 = sld [smem:[#allocation4 + %s243]]
        %vm250 = vcmp.eq.s32.totalorder %v245, 0
        %v251 = vstv %s248
        %v252 = vsel %vm250, %v251, 0
        %v253 = vstv %s249
        %v254 = vsel %vm250, %v253, 0
        %s255 = sadd.s32 %s243, 1
        %s256 = sld [smem:[#allocation3 + %s255]]
        %s257 = sld [smem:[#allocation4 + %s255]]
        %vm258 = vcmp.eq.s32.totalorder %v245, 1
        %v259 = vstv %s256
        %v260 = vsel %vm258, %v259, %v252
        %v261 = vstv %s257
        %v262 = vsel %vm258, %v261, %v254
        %s263 = sadd.s32 %s243, 2
        %s264 = sld [smem:[#allocation3 + %s263]]
        %s265 = sld [smem:[#allocation4 + %s263]]
        %vm266 = vcmp.eq.s32.totalorder %v245, 2
        %v267 = vstv %s264
        %v268 = vsel %vm266, %v267, %v260
        %v269 = vstv %s265
        %v270 = vsel %vm266, %v269, %v262
        %s271 = sadd.s32 %s243, 3
        %s272 = sld [smem:[#allocation3 + %s271]]
        %s273 = sld [smem:[#allocation4 + %s271]]
        %vm274 = vcmp.eq.s32.totalorder %v245, 3
        %v275 = vstv %s272
        %v276 = vsel %vm274, %v275, %v268
        %v277 = vstv %s273
        %v278 = vsel %vm274, %v277, %v270
        %s279 = sadd.s32 %s243, 4
        %s280 = sld [smem:[#allocation3 + %s279]]
        %s281 = sld [smem:[#allocation4 + %s279]]
        %vm282 = vcmp.eq.s32.totalorder %v245, 4
        %v283 = vstv %s280
        %v284 = vsel %vm282, %v283, %v276
        %v285 = vstv %s281
        %v286 = vsel %vm282, %v285, %v278
        %s287 = sadd.s32 %s243, 5
        %s288 = sld [smem:[#allocation3 + %s287]]
        %s289 = sld [smem:[#allocation4 + %s287]]
        %vm290 = vcmp.eq.s32.totalorder %v245, 5
        %v291 = vstv %s288
        %v292 = vsel %vm290, %v291, %v284
        %v293 = vstv %s289
        %v294 = vsel %vm290, %v293, %v286
        %s295 = sadd.s32 %s243, 6
        %s296 = sld [smem:[#allocation3 + %s295]]
        %s297 = sld [smem:[#allocation4 + %s295]]
        %vm298 = vcmp.eq.s32.totalorder %v245, 6
        %v299 = vstv %s296
        %v300 = vsel %vm298, %v299, %v292
        %v301 = vstv %s297
        %v302 = vsel %vm298, %v301, %v294
        %s303 = sadd.s32 %s243, 7
        %s304 = sld [smem:[#allocation3 + %s303]]
        %s305 = sld [smem:[#allocation4 + %s303]]
        %vm306 = vcmp.eq.s32.totalorder %v245, 7
        %v307 = vstv %s304
        %v308 = vsel %vm306, %v307, %v300
        %v309 = vstv %s305
        %v310 = vsel %vm306, %v309, %v302
        %vm311 = vcmp.eq.s32.totalorder %v247, %v308
        %v312 = vsel %vm311, 1, 0
        %v313 = vcvt.s32.f32 %v312
        %v314 = vpack.c.bf16 %v313, %v313
        %v315 = vld [vmem:[%s2] sm:$0xf]
        %v316 = vld [vmem:[%s2 + $0x4] sm:$0xf]
        %v317 = vld [vmem:[%s2 + $0x8] sm:$0xf]
        %v318 = vld [vmem:[%s2 + $0xc] sm:$0xf]
        %v319 = vld [vmem:[%s2 + $0x10] sm:$0xf]
        %v320 = vld [vmem:[%s2 + $0x14] sm:$0xf]
        %v321 = vld [vmem:[%s2 + $0x18] sm:$0xf]
        %v322 = vld [vmem:[%s2 + $0x1c] sm:$0xf]
        %v323 = vld [vmem:[%s2 + $0x20] sm:$0xf]
        %v324 = vld [vmem:[%s2 + $0x24] sm:$0xf]
        %v325 = vld [vmem:[%s2 + $0x28] sm:$0xf]
        %v326 = vld [vmem:[%s2 + $0x2c] sm:$0xf]
        %v327 = vld [vmem:[%s2 + $0x30] sm:$0xf]
        %v328 = vld [vmem:[%s2 + $0x34] sm:$0xf]
        %v329 = vld [vmem:[%s2 + $0x38] sm:$0xf]
        %v330 = vld [vmem:[%s2 + $0x3c] sm:$0xf]
        %v331 = vld [vmem:[%s3] sm:$0x1]
        %v332 = vlaneseq
        %v333 = vshrl.u32 %v332, 7
        %v334 = vsub.s32 0, %v333
        %v335 = vrot.slane %v331, %v334
        %vm336 = vcmp.eq.s32.totalorder %v310, 1
        %v337 = vld [vmem:[%s3 + $0x1] sm:$0x1]
        %v338 = vlaneseq
        %v339 = vshrl.u32 %v338, 7
        %v340 = vsub.s32 0, %v339
        %v341 = vrot.slane %v337, %v340
        %v342 = vsel %vm336, %v341, %v335
        %v359 = vunpack.c.l.b16 %v315
        %v360 = vunpack.c.l.b16 %v316
        %v361 = vunpack.c.l.b16 %v317
        %v362 = vunpack.c.l.b16 %v318
        %v363 = vunpack.c.l.b16 %v319
        %v364 = vunpack.c.l.b16 %v320
        %v365 = vunpack.c.l.b16 %v321
        %v366 = vunpack.c.l.b16 %v322
        %v367 = vunpack.c.l.b16 %v323
        %v368 = vunpack.c.l.b16 %v324
        %v369 = vunpack.c.l.b16 %v325
        %v370 = vunpack.c.l.b16 %v326
        %v371 = vunpack.c.l.b16 %v327
        %v372 = vunpack.c.l.b16 %v328
        %v373 = vunpack.c.l.b16 %v329
        %v374 = vunpack.c.l.b16 %v330
        %v375 = vpack.c.b16 %v360, %v359
        %v376 = vpack.c.b16 %v362, %v361
        %v377 = vpack.c.b16 %v364, %v363
        %v378 = vpack.c.b16 %v366, %v365
        %v379 = vpack.c.b16 %v368, %v367
        %v380 = vpack.c.b16 %v370, %v369
        %v381 = vpack.c.b16 %v372, %v371
        %v382 = vpack.c.b16 %v374, %v373
        %391 = vmatprep.subr.bf16.mxu0 0
        %392 = vmatpush1.bf16.msra.mxu0 %v375
        %393 = vmatprep.subr.bf16.mxu0 0
        %394 = vmatpush1.bf16.msra.mxu0 %v376
        %395 = vmatprep.subr.bf16.mxu0 0
        %396 = vmatpush1.bf16.msra.mxu0 %v377
        %397 = vmatprep.subr.bf16.mxu0 0
        %398 = vmatpush1.bf16.msra.mxu0 %v378
        %399 = vmatprep.subr.bf16.mxu0 0
        %400 = vmatpush1.bf16.msra.mxu0 %v379
        %401 = vmatprep.subr.bf16.mxu0 0
        %402 = vmatpush1.bf16.msra.mxu0 %v380
        %403 = vmatprep.subr.bf16.mxu0 0
        %404 = vmatpush1.bf16.msra.mxu0 %v381
        %405 = vmatprep.subr.bf16.mxu0 0
        %406 = vmatpush1.bf16.msra.mxu0 %v382
        %407 = vmatprep.subr.bf16.mxu0 0
        %408 = vmatpush1.bf16.msra.mxu0 0
        %409 = vmatprep.subr.bf16.mxu0 0
        %410 = vmatpush1.bf16.msra.mxu0 0
        %411 = vmatprep.subr.bf16.mxu0 0
        %412 = vmatpush1.bf16.msra.mxu0 0
        %413 = vmatprep.subr.bf16.mxu0 0
        %414 = vmatpush1.bf16.msra.mxu0 0
        %415 = vmatprep.subr.bf16.mxu0 0
        %416 = vmatpush1.bf16.msra.mxu0 0
        %417 = vmatprep.subr.bf16.mxu0 0
        %418 = vmatpush1.bf16.msra.mxu0 0
        %419 = vmatprep.subr.bf16.mxu0 0
        %420 = vmatpush1.bf16.msra.mxu0 0
        %421 = vmatprep.subr.bf16.mxu0 0
        %422 = vmatpush1.bf16.msra.mxu0 0
        %423 = vmatprep.mubr.bf16.mxu0 0
        %424 = vmatmul.mubr.bf16.gmra.mrb[0].mxu0 %v314
        %v425 = vpop.f32.mrb[0].mxu0
        %v426 = vadd.f32 %v342, %v425
        %v427 = vpop.f32.mrb[0].mxu0
        %v428 = vpop.f32.mrb[0].mxu0
        %v429 = vpop.f32.mrb[0].mxu0
        %430 = vdwg.mxu0
        %vm431 = vcmask 130048
        %v432 = vsel %vm431, %v426, 0.0
        %433 = vadd.xlane.f32.xlu0 %v432
        %v434 = vpop.xlane.xlu0 %433
        %v435 = vrcp.pop 16.0
        %v436 = vmul.f32 %v434, %v435
        %v437 = vmul.f32 %v426, %v426
        %v438 = vsel %vm431, %v437, 0.0
        %439 = vadd.xlane.f32.xlu0 %v438
        %v440 = vpop.xlane.xlu0 %439
        %v441 = vmul.f32 %v440, %v435
        %v442 = vmul.f32 %v436, %v436
        %v443 = vsub.f32 %v441, %v442
        %v444 = vsub.f32 %v426, %v436
        %v445 = vadd.f32 %v443, 1e-12
        %v446 = vrsqrt.pop %v445
        %v447 = vmul.f32 %v444, %v446
        %v448 = vld [vmem:[%s4] sm:$0x1]
        %v450 = vlaneseq
        %v451 = vshrl.u32 %v450, 7
        %v452 = vsub.s32 0, %v451
        %v453 = vrot.slane %v448, %v452
        %v455 = vmul.f32 %v447, %v453
        %v456 = vld [vmem:[%s5] sm:$0x1]
        %v458 = vlaneseq
        %v459 = vshrl.u32 %v458, 7
        %v460 = vsub.s32 0, %v459
        %v461 = vrot.slane %v456, %v460
        %v463 = vadd.f32 %v455, %v461
        %v464 = vld [vmem:[%s6] sm:$0xff]
        %v465 = vld [vmem:[%s6 + $0x8] sm:$0xff]
        %v466 = vld [vmem:[%s7] sm:$0x1]
        %v468 = vlaneseq
        %v469 = vshrl.u32 %v468, 7
        %v470 = vsub.s32 0, %v469
        %v471 = vrot.slane %v466, %v470
        %v474 = vsel %vm431, %v463, 0
        %476 = vmatprep.subr.mxu0 0.0
        %477 = vmatpush1.msra.mxu0 %v464
        %478 = vmatprep.subr.mxu0 0.0
        %479 = vmatpush1.msra.mxu0 %v465
        %480 = vmatprep.subr.mxu0 0.0
        %481 = vmatpush1.msra.mxu0 0.0
        %482 = vmatprep.subr.mxu0 0.0
        %483 = vmatpush1.msra.mxu0 0.0
        %484 = vmatprep.subr.mxu0 0.0
        %485 = vmatpush1.msra.mxu0 0.0
        %486 = vmatprep.subr.mxu0 0.0
        %487 = vmatpush1.msra.mxu0 0.0
        %488 = vmatprep.subr.mxu0 0.0
        %489 = vmatpush1.msra.mxu0 0.0
        %490 = vmatprep.subr.mxu0 0.0
        %491 = vmatpush1.msra.mxu0 0.0
        %492 = vmatprep.subr.mxu0 0.0
        %493 = vmatpush1.msra.mxu0 0.0
        %494 = vmatprep.subr.mxu0 0.0
        %495 = vmatpush1.msra.mxu0 0.0
        %496 = vmatprep.subr.mxu0 0.0
        %497 = vmatpush1.msra.mxu0 0.0
        %498 = vmatprep.subr.mxu0 0.0
        %499 = vmatpush1.msra.mxu0 0.0
        %500 = vmatprep.subr.mxu0 0.0
        %501 = vmatpush1.msra.mxu0 0.0
        %502 = vmatprep.subr.mxu0 0.0
        %503 = vmatpush1.msra.mxu0 0.0
        %504 = vmatprep.subr.mxu0 0.0
        %505 = vmatpush1.msra.mxu0 0.0
        %506 = vmatprep.subr.mxu0 0.0
        %507 = vmatpush1.msra.mxu0 0.0
        %508 = vmatprep.subr.mxu0 0.0
        %509 = vmatpush1.msra.mxu0 0.0
        %510 = vmatprep.subr.mxu0 0.0
        %511 = vmatpush1.msra.mxu0 0.0
        %512 = vmatprep.subr.mxu0 0.0
        %513 = vmatpush1.msra.mxu0 0.0
        %514 = vmatprep.subr.mxu0 0.0
        %515 = vmatpush1.msra.mxu0 0.0
        %516 = vmatprep.subr.mxu0 0.0
        %517 = vmatpush1.msra.mxu0 0.0
        %518 = vmatprep.subr.mxu0 0.0
        %519 = vmatpush1.msra.mxu0 0.0
        %520 = vmatprep.subr.mxu0 0.0
        %521 = vmatpush1.msra.mxu0 0.0
        %522 = vmatprep.subr.mxu0 0.0
        %523 = vmatpush1.msra.mxu0 0.0
        %524 = vmatprep.subr.mxu0 0.0
        %525 = vmatpush1.msra.mxu0 0.0
        %526 = vmatprep.subr.mxu0 0.0
        %527 = vmatpush1.msra.mxu0 0.0
        %528 = vmatprep.subr.mxu0 0.0
        %529 = vmatpush1.msra.mxu0 0.0
        %530 = vmatprep.subr.mxu0 0.0
        %531 = vmatpush1.msra.mxu0 0.0
        %532 = vmatprep.subr.mxu0 0.0
        %533 = vmatpush1.msra.mxu0 0.0
        %534 = vmatprep.subr.mxu0 0.0
        %535 = vmatpush1.msra.mxu0 0.0
        %536 = vmatprep.subr.mxu0 0.0
        %537 = vmatpush1.msra.mxu0 0.0
        %538 = vmatprep.subr.mxu0 0.0
        %539 = vmatpush1.msra.mxu0 0.0
        %540 = vmatprep.mubr.f32.mxu0 0.0
        %541 = vmatmul.mubr.f32.gmra.mrb[0].mxu0 %v474
        %v542 = vpop.f32.mrb[0].mxu0
        %v543 = vadd.f32 %v471, %v542
        %v544 = vpop.f32.mrb[0].mxu0
        %545 = vdwg.mxu0
        %546 = vst [vmem:[%s241] sm:$0xff] %v543
        %s547 = sand.u32 %s166, 1
        %s548 = scalar_lea.sflag [#allocation6], %s547
        %s549 = sand.u32 %s166, 1
        %s550 = smul.addr %s549, 8
        %s551 = scalar_lea.vmem [#allocation5], %s550
        // Predicated region
        $region45: #{tpu_custom_call.1} parent=43 // pred_check
          %p552 = pneg %p176
        $region46: #{tpu_custom_call.1} parent=43 // pred_check_branch
          %554 = sbr.rel (%p552) target = $region48
        $region47: #{tpu_custom_call.1} parent=43 // pred_region
          %s556 = ssub.s32 128, 128
          %557 = vsyncadd %s548, %s556
          %s558 = smul.addr %s32, 128
          %s559 = scalar_lea.hbm %s8, %s558
          %s561 = sshll.u32 %s551, 4
          %s562 = int_to_ptr.vmem [resolvable:$true] %s561
          %564 = dma.vmem_to_hbm [thread:$0]  %s562, 128, %s559, %s548
        $region48: #{tpu_custom_call.1} parent=43 // pred_fallthru
          _
      $region44: #{tpu_custom_call.1} parent=5 // pred_fallthru
        _
      %p565 = scmp.le.s32.totalorder 2, %s27
      // Predicated region
      $region49: #{tpu_custom_call.1} parent=5 // pred_check
        %p566 = pneg %p565
      $region50: #{tpu_custom_call.1} parent=5 // pred_check_branch
        %568 = sbr.rel (%p566) target = $region52
      $region51: #{tpu_custom_call.1} parent=5 // pred_region
        %s569 = ssub.s32 %s27, 2
        // Predicated region
        $region53: #{tpu_custom_call.1} parent=51 // pred_check
          %p570 = pneg %p182
        $region54: #{tpu_custom_call.1} parent=51 // pred_check_branch
          %572 = sbr.rel (%p570) target = $region56
        $region55: #{tpu_custom_call.1} parent=51 // pred_region
          %s573 = sand.u32 %s167, 1
          %s574 = scalar_lea.sflag [#allocation6], %s573
          %s575 = sand.u32 %s167, 1
          %s576 = smul.addr %s575, 8
          %s577 = scalar_lea.vmem [#allocation5], %s576
          %578 = dma.done %s574, 128
        $region56: #{tpu_custom_call.1} parent=51 // pred_fallthru
          _
      $region52: #{tpu_custom_call.1} parent=5 // pred_fallthru
        _
    $region6: #{tpu_custom_call.1} parent=1 // loop_footer
      %s31 = sadd.s32 1, %s27
    $region7: #{tpu_custom_call.1} parent=1 // loop_footer_branch
      %26 = sbr.rel target = $region3
    $region8: #{tpu_custom_call.1} parent=1 // loop_exit
      _
    %579 = vsyncpa [#allocation6], 1
    %s580 = scalar_lea.sflag [#allocation6], 1
    %581 = vsyncpa %s580, 1

</llo_original>
